<compile_context>
chip_gen: v5e
topology: v5e:2x2
jax: 0.10.0
libtpu: 0.0.40
codegen_flags: <defaults>
</compile_context>

<pallas_src>
import functools

import jax
import jax.numpy as jnp
from jax.experimental import pallas as pl
from jax.experimental.pallas import tpu as pltpu

_MAX_ROWS_PER_TILE = 2048  # 128-lane output rows per grid step


def _rope_packed_kernel(pos_ref, inv_ref, cos_ref, sin_ref, *, g, half):
    """Lane-dense RoPE tile.

    pos_ref : (tR, g)   f32  -- g consecutive positions per 128-lane output row
    inv_ref : (1, half) f32  -- inv_freq
    cos/sin : (tR, 128) out dtype; per-row lane layout:
              [cos(p0*inv) | cos(p0*inv) | cos(p1*inv) | cos(p1*inv) | ...]
    """
    pos = pos_ref[...]                                 # (tR, g) f32
    inv = inv_ref[...]                                 # (1, half) f32

    # Half-width freqs packed along lanes: (tR, g*half) == (tR, 64).
    parts = [pos[:, i:i + 1] * inv for i in range(g)]
    freqs = parts[0] if g == 1 else jnp.concatenate(parts, axis=-1)

    c = jnp.cos(freqs)                                 # transcendentals on half width only
    s = jnp.sin(freqs)

    def dup_halves(t):
        # [c_0 | c_1 | ...] -> [c_0 | c_0 | c_1 | c_1 | ...]  -> (tR, 128) lane-dense
        pieces = []
        for i in range(g):
            blk = t[:, i * half:(i + 1) * half]
            pieces.append(blk)
            pieces.append(blk)
        return jnp.concatenate(pieces, axis=-1)

    cos_ref[...] = dup_halves(c).astype(cos_ref.dtype)
    sin_ref[...] = dup_halves(s).astype(sin_ref.dtype)


def _rope_general_kernel(pos_ref, inv_ref, cos_ref, sin_ref):
    """Fallback tile for shapes that don't pack into 128 lanes.

    pos_ref : (tS, 1) f32, inv_ref : (1, half) f32, outs : (tS, dim).
    """
    pos = pos_ref[...]                                 # (tS, 1)
    inv = inv_ref[...]                                 # (1, half)
    freqs = pos * inv                                  # (tS, half)
    c = jnp.cos(freqs)                                 # half-width transcendentals
    s = jnp.sin(freqs)
    cos_ref[...] = jnp.concatenate([c, c], axis=-1).astype(cos_ref.dtype)
    sin_ref[...] = jnp.concatenate([s, s], axis=-1).astype(sin_ref.dtype)


def llama_rotary_embedding(x, position_ids, *, dim, base=10000.0,
                           scaling_factor=1.0,
                           max_rows_per_tile=_MAX_ROWS_PER_TILE):
    """Pallas equivalent of LlamaRotaryEmbedding(dim, base=...).forward(x, position_ids).

    x:            array whose dtype determines the output dtype (values unused).
    position_ids: (B, S) integer positions.
    Returns (cos, sin), each (B, S, dim) in x.dtype.
    """
    del scaling_factor  # stored by the module but unused in this forward
    assert dim % 2 == 0, "RoPE dim must be even"
    B, S = position_ids.shape
    half = dim // 2
    out_dtype = x.dtype

    inv_freq = 1.0 / (base ** (jnp.arange(0, dim, 2, dtype=jnp.float32) / dim))
    inv_in = inv_freq.reshape(1, half)
    pos_f32 = position_ids.astype(jnp.float32)        # cast once, outside the kernel

    max_rows = max(8, (int(max_rows_per_tile) // 16) * 16)

    N = B * S                                          # flatten (B, S) -> rows (row-major)
    packed_ok = (dim <= 128) and (128 % dim == 0) and (N % (128 // dim) == 0)

    if packed_ok:
        # ---- lane-dense packed path: g positions per 128-lane output row ----
        g = 128 // dim
        R = N // g                                     # 128-lane output rows
        tR = R if R <= max_rows else max_rows
        grid = (pl.cdiv(R, tR),)

        pos_in = pos_f32.reshape(R, g)
        kernel = functools.partial(_rope_packed_kernel, g=g, half=half)

        cos, sin = pl.pallas_call(
            kernel,
            out_shape=(jax.ShapeDtypeStruct((R, 128), out_dtype),
                       jax.ShapeDtypeStruct((R, 128), out_dtype)),
            grid_spec=pltpu.PrefetchScalarGridSpec(
                num_scalar_prefetch=0,
                grid=grid,
                in_specs=[
                    pl.BlockSpec((tR, g), lambda r: (r, 0)),      # positions
                    pl.BlockSpec((1, half), lambda r: (0, 0)),    # shared inv_freq
                ],
                out_specs=[
                    pl.BlockSpec((tR, 128), lambda r: (r, 0)),
                    pl.BlockSpec((tR, 128), lambda r: (r, 0)),
                ],
            ),
            compiler_params=pltpu.CompilerParams(
                dimension_semantics=("parallel",)),
        )(pos_in, inv_in)
        # (R, 128) and (B, S, dim) share the same row-major layout -> free reshape.
        return cos.reshape(B, S, dim), sin.reshape(B, S, dim)

    # ---- general fallback path (rows don't pack into 128 lanes) ----
    tS = N if N <= max_rows else max_rows
    grid = (pl.cdiv(N, tS),)
    pos_in = pos_f32.reshape(N, 1)

    cos, sin = pl.pallas_call(
        _rope_general_kernel,
        out_shape=(jax.ShapeDtypeStruct((N, dim), out_dtype),
                   jax.ShapeDtypeStruct((N, dim), out_dtype)),
        grid_spec=pltpu.PrefetchScalarGridSpec(
            num_scalar_prefetch=0,
            grid=grid,
            in_specs=[
                pl.BlockSpec((tS, 1), lambda r: (r, 0)),
                pl.BlockSpec((1, half), lambda r: (0, 0)),
            ],
            out_specs=[
                pl.BlockSpec((tS, dim), lambda r: (r, 0)),
                pl.BlockSpec((tS, dim), lambda r: (r, 0)),
            ],
        ),
        compiler_params=pltpu.CompilerParams(
            dimension_semantics=("parallel",)),
    )(pos_in, inv_in)
    return cos.reshape(B, S, dim), sin.reshape(B, S, dim)


def _reference(x, position_ids, dim, base=10000.0):
    inv_freq = 1.0 / (base ** (jnp.arange(0, dim, 2, dtype=jnp.float32) / dim))
    freqs = position_ids.astype(jnp.float32)[:, :, None] * inv_freq[None, None, :]
    emb = jnp.concatenate([freqs, freqs], axis=-1)
    return jnp.cos(emb).astype(x.dtype), jnp.sin(emb).astype(x.dtype)


if __name__ == "__main__":
    key = jax.random.PRNGKey(0)
    B, S, dim, hidden = 2, 8, 32, 32

    # x is only used for its dtype in the reference module.
    x = jax.random.normal(key, (B, S, hidden), dtype=jnp.float32)
    position_ids = jnp.broadcast_to(jnp.arange(S, dtype=jnp.int32), (B, S))

    # Packed (lane-dense) path: dim=32 divides 128 and B*S packs evenly.
    cos, sin = llama_rotary_embedding(x, position_ids, dim=dim, base=10000.0)
    jax.block_until_ready((cos, sin))

    cos_ref, sin_ref = _reference(x, position_ids, dim)
    assert cos.shape == (B, S, dim) and sin.shape == (B, S, dim)
    assert cos.dtype == x.dtype and sin.dtype == x.dtype
    assert jnp.allclose(cos, cos_ref, atol=1e-5, rtol=1e-5)
    assert jnp.allclose(sin, sin_ref, atol=1e-5, rtol=1e-5)

    # General fallback path: B*S not divisible by 128//dim, bf16 output dtype.
    S2 = 5
    x2 = jax.random.normal(jax.random.PRNGKey(0), (B, S2, hidden), dtype=jnp.bfloat16)
    pos2 = jnp.broadcast_to(jnp.arange(S2, dtype=jnp.int32), (B, S2))
    cos2, sin2 = llama_rotary_embedding(x2, pos2, dim=dim, base=10000.0)
    jax.block_until_ready((cos2, sin2))

    cos2_ref, sin2_ref = _reference(x2, pos2, dim)
    assert cos2.shape == (B, S2, dim) and cos2.dtype == jnp.bfloat16
    assert jnp.allclose(cos2.astype(jnp.float32), cos2_ref.astype(jnp.float32), atol=2e-2)
    assert jnp.allclose(sin2.astype(jnp.float32), sin2_ref.astype(jnp.float32), atol=2e-2)

    print("KERNEL_OK")
</pallas_src>

<mosaic_0001>
module attributes {stable_mosaic.version = 11 : i64} {
  func.func @_rope_packed_kernel(%arg0: i32, %arg1: memref<4x4xf32, #tpu.memory_space<vmem>>, %arg2: memref<1x16xf32, #tpu.memory_space<vmem>>, %arg3: memref<4x128xf32, #tpu.memory_space<vmem>>, %arg4: memref<4x128xf32, #tpu.memory_space<vmem>>) attributes {dimension_semantics = [#tpu.dimension_semantics<parallel>], iteration_bounds = array<i64: 1>, scalar_prefetch = 0 : i64, scratch_operands = 0 : i64, tpu.core_type = #tpu.core_type<tc>, window_params = [{transform_indices = @transform_0, window_bounds = array<i64: 4, 4>}, {pipeline_mode = #tpu.pipeline_mode<synchronous>, transform_indices = @transform_1, window_bounds = array<i64: 1, 16>}, {transform_indices = @transform_2, window_bounds = array<i64: 4, 128>}, {transform_indices = @transform_3, window_bounds = array<i64: 4, 128>}]} {
    %c0 = arith.constant 0 : index
    %c0_0 = arith.constant 0 : index
    %0 = vector.load %arg1[%c0, %c0_0] : memref<4x4xf32, #tpu.memory_space<vmem>>, vector<4x4xf32>
    %c0_1 = arith.constant 0 : index
    %c0_2 = arith.constant 0 : index
    %1 = vector.load %arg2[%c0_1, %c0_2] : memref<1x16xf32, #tpu.memory_space<vmem>>, vector<1x16xf32>
    %2 = vector.extract_strided_slice %0 {offsets = [0, 0], sizes = [4, 1], strides = [1, 1]} : vector<4x4xf32> to vector<4x1xf32>
    %3 = vector.broadcast %2 : vector<4x1xf32> to vector<4x16xf32>
    %4 = vector.broadcast %1 : vector<1x16xf32> to vector<4x16xf32>
    %5 = arith.mulf %3, %4 : vector<4x16xf32>
    %6 = vector.extract_strided_slice %0 {offsets = [0, 1], sizes = [4, 1], strides = [1, 1]} : vector<4x4xf32> to vector<4x1xf32>
    %7 = vector.broadcast %6 : vector<4x1xf32> to vector<4x16xf32>
    %8 = vector.broadcast %1 : vector<1x16xf32> to vector<4x16xf32>
    %9 = arith.mulf %7, %8 : vector<4x16xf32>
    %10 = vector.extract_strided_slice %0 {offsets = [0, 2], sizes = [4, 1], strides = [1, 1]} : vector<4x4xf32> to vector<4x1xf32>
    %11 = vector.broadcast %10 : vector<4x1xf32> to vector<4x16xf32>
    %12 = vector.broadcast %1 : vector<1x16xf32> to vector<4x16xf32>
    %13 = arith.mulf %11, %12 : vector<4x16xf32>
    %14 = vector.extract_strided_slice %0 {offsets = [0, 3], sizes = [4, 1], strides = [1, 1]} : vector<4x4xf32> to vector<4x1xf32>
    %15 = vector.broadcast %14 : vector<4x1xf32> to vector<4x16xf32>
    %16 = vector.broadcast %1 : vector<1x16xf32> to vector<4x16xf32>
    %17 = arith.mulf %15, %16 : vector<4x16xf32>
    %18 = tpu.concatenate %5, %9, %13, %17 in 1 : vector<4x16xf32>, vector<4x16xf32>, vector<4x16xf32>, vector<4x16xf32> -> vector<4x64xf32>
    %19 = math.cos %18 : vector<4x64xf32>
    %20 = math.sin %18 : vector<4x64xf32>
    %21 = vector.extract_strided_slice %19 {offsets = [0, 0], sizes = [4, 16], strides = [1, 1]} : vector<4x64xf32> to vector<4x16xf32>
    %22 = vector.extract_strided_slice %19 {offsets = [0, 16], sizes = [4, 16], strides = [1, 1]} : vector<4x64xf32> to vector<4x16xf32>
    %23 = vector.extract_strided_slice %19 {offsets = [0, 32], sizes = [4, 16], strides = [1, 1]} : vector<4x64xf32> to vector<4x16xf32>
    %24 = vector.extract_strided_slice %19 {offsets = [0, 48], sizes = [4, 16], strides = [1, 1]} : vector<4x64xf32> to vector<4x16xf32>
    %25 = tpu.concatenate %21, %21, %22, %22, %23, %23, %24, %24 in 1 : vector<4x16xf32>, vector<4x16xf32>, vector<4x16xf32>, vector<4x16xf32>, vector<4x16xf32>, vector<4x16xf32>, vector<4x16xf32>, vector<4x16xf32> -> vector<4x128xf32>
    %c0_3 = arith.constant 0 : index
    %c0_4 = arith.constant 0 : index
    %26 = vector.load %arg3[%c0_3, %c0_4] : memref<4x128xf32, #tpu.memory_space<vmem>>, vector<4x128xf32>
    tpu.vector_store %arg3[%c0_3, %c0_4], %25 {strides = array<i32>} : memref<4x128xf32, #tpu.memory_space<vmem>>, vector<4x128xf32>,
    %27 = vector.extract_strided_slice %20 {offsets = [0, 0], sizes = [4, 16], strides = [1, 1]} : vector<4x64xf32> to vector<4x16xf32>
    %28 = vector.extract_strided_slice %20 {offsets = [0, 16], sizes = [4, 16], strides = [1, 1]} : vector<4x64xf32> to vector<4x16xf32>
    %29 = vector.extract_strided_slice %20 {offsets = [0, 32], sizes = [4, 16], strides = [1, 1]} : vector<4x64xf32> to vector<4x16xf32>
    %30 = vector.extract_strided_slice %20 {offsets = [0, 48], sizes = [4, 16], strides = [1, 1]} : vector<4x64xf32> to vector<4x16xf32>
    %31 = tpu.concatenate %27, %27, %28, %28, %29, %29, %30, %30 in 1 : vector<4x16xf32>, vector<4x16xf32>, vector<4x16xf32>, vector<4x16xf32>, vector<4x16xf32>, vector<4x16xf32>, vector<4x16xf32>, vector<4x16xf32> -> vector<4x128xf32>
    %c0_5 = arith.constant 0 : index
    %c0_6 = arith.constant 0 : index
    %32 = vector.load %arg4[%c0_5, %c0_6] : memref<4x128xf32, #tpu.memory_space<vmem>>, vector<4x128xf32>
    tpu.vector_store %arg4[%c0_5, %c0_6], %31 {strides = array<i32>} : memref<4x128xf32, #tpu.memory_space<vmem>>, vector<4x128xf32>,
    return
  }
  func.func @transform_0(%arg0: i32) -> (i32, i32) {
    %c0_i32 = arith.constant 0 : i32
    %c0_i32_0 = arith.constant 0 : i32
    return %arg0, %c0_i32 : i32, i32
  }
  func.func @transform_1(%arg0: i32) -> (i32, i32) {
    %c0_i32 = arith.constant 0 : i32
    %c0_i32_0 = arith.constant 0 : i32
    %c0_i32_1 = arith.constant 0 : i32
    return %c0_i32, %c0_i32_0 : i32, i32
  }
  func.func @transform_2(%arg0: i32) -> (i32, i32) {
    %c0_i32 = arith.constant 0 : i32
    %c0_i32_0 = arith.constant 0 : i32
    return %arg0, %c0_i32 : i32, i32
  }
  func.func @transform_3(%arg0: i32) -> (i32, i32) {
    %c0_i32 = arith.constant 0 : i32
    %c0_i32_0 = arith.constant 0 : i32
    return %arg0, %c0_i32 : i32, i32
  }
}

</mosaic_0001>

<llo_original>
// kernel: tpu_custom_call.1
$region0: #{tpu_custom_call.1}
  #allocation0 [shape = 'u32[]', space=smem, size = 0x4, offset = 0x4, fixed_abs, tag = 'smem constant byte address 0x4 - core index']
  #allocation1 [shape = 'u32[72,128]{1,0:T(1,128)}', space=vmem, size = 0x9000, scoped, tag = 'internal scratch']
  %s0 = inlined_call_operand.hbm [shape: f32[4,4], index: 0, kind: input, shape index: {}]
  %s1 = inlined_call_operand.hbm [shape: f32[1,16], index: 1, kind: input, shape index: {}]
  %s2 = inlined_call_operand.hbm [shape: f32[4,128], index: 2, kind: output, shape index: {0}]
  %s3 = inlined_call_operand.hbm [shape: f32[4,128], index: 3, kind: output, shape index: {1}]
  %4 = xla_tuple %s2, %s3
  %s5 = sld [smem:[#allocation0]]
  $region34: #{tpu_custom_call.1} parent=0
    _
  %s7 = ssub.s32 1, %s5
  %s8 = scalar_select 0, %s7, %s5
  $region1: #{tpu_custom_call.1} parent=0
    #allocation2 [shape = 'u8[2048]{0}', space=vmem, size = 0x800, scoped, tag = 'input window, operand 0, single buffered']
    #allocation3 [shape = 's32[1]{0}', space=sflag, size = 0x4, scoped, tag = 'scoped memory for tpu_custom_call.1']
    #allocation4 [shape = 's32[1]{0}', space=sflag, size = 0x4, scoped, tag = 'scoped memory for tpu_custom_call.1']
    #allocation5 [shape = 'u8[512]{0}', space=vmem, size = 0x400, scoped, tag = 'input window, operand 1, single buffered']
    #allocation6 [shape = 's32[1]{0}', space=sflag, size = 0x4, scoped, tag = 'scoped memory for tpu_custom_call.1']
    #allocation7 [shape = 'u8[2048]{0}', space=vmem, size = 0x800, scoped, tag = 'output window, operand 0, single buffered']
    #allocation8 [shape = 'u8[2048]{0}', space=vmem, size = 0x800, scoped, tag = 'output window, operand 1, single buffered']
    #allocation9 [shape = 's32[1]{0}', space=sflag, size = 0x4, scoped, tag = 'scoped memory for tpu_custom_call.1']
    %9 = vsyncpa [#allocation3], 0
    %10 = vsyncpa [#allocation6], 0
    %11 = vsyncpa [#allocation4], 0
    %12 = vsyncpa [#allocation9], 0
    // Predicated region
    $region2: #{tpu_custom_call.1} parent=1 // pred_check
      _
    $region3: #{tpu_custom_call.1} parent=1 // pred_check_branch
      %14 = sbr.rel (0) target = $region5
    $region4: #{tpu_custom_call.1} parent=1 // pred_region
      %16 = vsyncadd [#allocation3], 0
      %s18 = sshll.u32 %s0, 4
      %s19 = int_to_ptr.hbm [resolvable:$true] %s18
      %s20 = sshll.u32 [#allocation2], 4
      %s21 = int_to_ptr.vmem [resolvable:$true] %s20
      %23 = dma.hbm_to_vmem [thread:$0]  %s19, 64, %s21, [#allocation3]
    $region5: #{tpu_custom_call.1} parent=1 // pred_fallthru
      _
    // Predicated region
    $region6: #{tpu_custom_call.1} parent=1 // pred_check
      _
    $region7: #{tpu_custom_call.1} parent=1 // pred_check_branch
      %25 = sbr.rel (0) target = $region9
    $region8: #{tpu_custom_call.1} parent=1 // pred_region
      %27 = vsyncadd [#allocation6], 0
      %s29 = sshll.u32 %s1, 4
      %s30 = int_to_ptr.hbm [resolvable:$true] %s29
      %s31 = sshll.u32 [#allocation5], 4
      %s32 = int_to_ptr.vmem [resolvable:$true] %s31
      %34 = dma.hbm_to_vmem [thread:$0]  %s30, 16, %s32, [#allocation6]
    $region9: #{tpu_custom_call.1} parent=1 // pred_fallthru
      _
    // Predicated region
    $region10: #{tpu_custom_call.1} parent=1 // pred_check
      _
    $region11: #{tpu_custom_call.1} parent=1 // pred_check_branch
      %36 = sbr.rel (0) target = $region13
    $region12: #{tpu_custom_call.1} parent=1 // pred_region
      %38 = dma.done [#allocation3], 64
    $region13: #{tpu_custom_call.1} parent=1 // pred_fallthru
      _
    // Predicated region
    $region14: #{tpu_custom_call.1} parent=1 // pred_check
      _
    $region15: #{tpu_custom_call.1} parent=1 // pred_check_branch
      %40 = sbr.rel (0) target = $region17
    $region16: #{tpu_custom_call.1} parent=1 // pred_region
      %42 = dma.done [#allocation6], 16
    $region17: #{tpu_custom_call.1} parent=1 // pred_fallthru
      _
    %v43 = vld [vmem:[#allocation2] sm:$0xf]
    %v44 = vld [vmem:[#allocation5] sm:$0x1]
    %46 = vset.pattern.permute.xlu0 0
    %47 = vperm.xlu0 %46, %v43
    %v48 = vpop.permute.xlu0 %47
    %v51 = vperm.slane %v44, 0
    %v53 = vmul.f32 %v48, %v51
    %54 = vset.pattern.permute.xlu0 1
    %55 = vperm.xlu0 %54, %v43
    %v56 = vpop.permute.xlu0 %55
    %v58 = vmul.f32 %v56, %v51
    %59 = vset.pattern.permute.xlu0 2
    %60 = vperm.xlu0 %59, %v43
    %v61 = vpop.permute.xlu0 %60
    %v63 = vmul.f32 %v61, %v51
    %64 = vset.pattern.permute.xlu0 3
    %65 = vperm.xlu0 %64, %v43
    %v66 = vpop.permute.xlu0 %65
    %v68 = vmul.f32 %v66, %v51
    %70 = vrot.lane.b32.xlu0 %v58, 16
    %v71 = vpop.permute.xlu0 %70
    %74 = vrot.lane.b32.xlu0 %v63, 32
    %v75 = vpop.permute.xlu0 %74
    %78 = vrot.lane.b32.xlu0 %v68, 48
    %v79 = vpop.permute.xlu0 %78
    %vm81 = vcmask 130048
    %v82 = vsel %vm81, %v53, %v71
    %vm83 = vcmask 261120
    %v84 = vsel %vm83, %v82, %v75
    %vm85 = vcmask 392192
    %v86 = vsel %vm85, %v84, %v79
    %v87 = vand.u32 2147483647, %v86
    %vm88 = vcmp.le.f32.partialorder %v87, 0.7853982
    %vm89 = vcmp.lt.s32.totalorder %v86, 0
    %v90 = vand.u32 %v86, 2139095040
    %v91 = vshrl.u32 %v90, 23
    %v92 = vsub.s32 %v91, 127
    %v93 = vand.u32 2147483647, %v86
    %v94 = vand.u32 %v93, 8388607
    %v95 = vor.u32 %v94, 8388608
    %v96 = vsub.s32 0, %v95
    %v97 = vadd.s32 %v92, 1
    %vm98 = vcmp.gt.s32.totalorder %v97, 0
    %v99 = vsel %vm98, %v97, 0
    %v100 = vshrl.u32 %v99, 5
    %v101 = vand.u32 %v99, 31
    %v102 = vsub.s32 32, %v101
    %v103 = vshrl.u32 683565275, %v102
    %v104 = vshll.u32 683565275, %v101
    %v105 = vshrl.u32 2475754826, %v102
    %v106 = vor.u32 %v104, %v105
    %v107 = vshll.u32 2475754826, %v101
    %v108 = vshrl.u32 2131351028, %v102
    %v109 = vor.u32 %v107, %v108
    %v110 = vshll.u32 2131351028, %v101
    %v111 = vshrl.u32 2102212464, %v102
    %v112 = vor.u32 %v110, %v111
    %v113 = vshll.u32 2102212464, %v101
    %v114 = vshrl.u32 920167782, %v102
    %v115 = vor.u32 %v113, %v114
    %v116 = vshll.u32 920167782, %v101
    %v117 = vshrl.u32 1326507024, %v102
    %v118 = vor.u32 %v116, %v117
    %vm119 = vcmp.lt.s32.totalorder %v100, 1
    %vm120 = vcmp.lt.s32.totalorder %v100, 2
    %vm121 = vcmp.lt.s32.totalorder %v100, 3
    %vm122 = vcmp.lt.s32.totalorder %v100, 4
    %v123 = vsel %vm119, %v103, %v106
    %v124 = vsel %vm122, %v112, 2102212464
    %v125 = vsel %vm121, %v109, %v124
    %v126 = vsel %vm120, %v123, %v125
    %v127 = vsel %vm119, %v106, %v109
    %v128 = vsel %vm122, %v115, 920167782
    %v129 = vsel %vm121, %v112, %v128
    %v130 = vsel %vm120, %v127, %v129
    %v131 = vsel %vm119, %v109, %v112
    %v132 = vsel %vm122, %v118, 1326507024
    %v133 = vsel %vm121, %v115, %v132
    %v134 = vsel %vm120, %v131, %v133
    %v135 = vshll.u32 %v95, 8
    %v136 = vand.u32 %v135, 65535
    %v137 = vshrl.u32 %v135, 16
    %v138 = vand.u32 %v134, 65535
    %v139 = vshrl.u32 %v134, 16
    %v140 = vmul.u32 %v136, %v138
    %v141 = vmul.u32 %v136, %v139
    %v142 = vmul.u32 %v137, %v138
    %v143 = vmul.u32 %v137, %v139
    %v144 = vshll.u32 %v141, 16
    %v145 = vshrl.u32 %v141, 16
    %v146 = vshll.u32 %v142, 16
    %v147 = vshrl.u32 %v142, 16
    %vm148 = vc.u32 %v140, %v144
    %v149 = vsel %vm148, 1, 0
    %v150 = vadd.s32 %v140, %v144
    %v151 = vadd.s32 %v143, %v149
    %vm152 = vc.u32 %v150, %v146
    %v153 = vsel %vm152, 1, 0
    %v154 = vadd.s32 %v150, %v146
    %v155 = vadd.s32 %v151, %v153
    %v156 = vadd.s32 %v155, %v145
    %v157 = vadd.s32 %v156, %v147
    %v158 = vand.u32 %v135, 65535
    %v159 = vshrl.u32 %v135, 16
    %v160 = vand.u32 %v130, 65535
    %v161 = vshrl.u32 %v130, 16
    %v162 = vmul.u32 %v158, %v160
    %v163 = vmul.u32 %v158, %v161
    %v164 = vmul.u32 %v159, %v160
    %v165 = vmul.u32 %v159, %v161
    %v166 = vshll.u32 %v163, 16
    %v167 = vshrl.u32 %v163, 16
    %v168 = vshll.u32 %v164, 16
    %v169 = vshrl.u32 %v164, 16
    %vm170 = vc.u32 %v162, %v166
    %v171 = vsel %vm170, 1, 0
    %v172 = vadd.s32 %v162, %v166
    %v173 = vadd.s32 %v165, %v171
    %vm174 = vc.u32 %v172, %v168
    %v175 = vsel %vm174, 1, 0
    %v176 = vadd.s32 %v172, %v168
    %v177 = vadd.s32 %v173, %v175
    %v178 = vadd.s32 %v177, %v167
    %v179 = vadd.s32 %v178, %v169
    %v180 = vmul.u32 %v135, %v126
    %v181 = vadd.s32 %v157, %v176
    %vm182 = vc.u32 %v157, %v176
    %v183 = vadd.s32 %v179, 1
    %v184 = vsel %vm182, %v183, %v179
    %v185 = vadd.s32 %v180, %v184
    %v186 = vadd.s32 %v185, 536870912
    %v187 = vshrl.u32 %v186, 30
    %v188 = vshll.u32 %v187, 30
    %v189 = vsub.s32 %v185, %v188
    %vm190 = vcmp.lt.s32.totalorder %v189, 0
    %v191 = vsub.s32 0, %v189
    %v192 = vsel %vm190, %v191, %v189
    %v193 = vclz %v192
    %v194 = vsub.s32 %v193, 2
    %vm195 = vcmp.gt.s32.totalorder 0, %v194
    %v196 = vsel %vm195, 0, %v194
    %v197 = vsub.s32 32, %v196
    %v198 = vshll.u32 %v189, %v196
    %v199 = vshrl.u32 %v181, %v197
    %v200 = vor.u32 %v198, %v199
    %v201 = vsub.s32 4294967266, %v196
    %v202 = vadd.s32 %v201, 127
    %v203 = vshll.u32 %v202, 23
    %v204 = vor.u32 4788187, %v203
    %v205 = vand.u32 2147483647, %v204
    %v207 = vcvt.s32.f32 %v200
    %v208 = vmul.f32 %v207, %v205
    %v209 = vxor.u32 %v208, 2147483648
    %v210 = vsel %vm89, %v209, %v208
    %v211 = vsub.s32 4, %v187
    %v212 = vsel %vm89, %v211, %v187
    %v213 = vsel %vm88, %v86, %v210
    %v214 = vsel %vm88, 0, %v212
    %v215 = vmul.f32 %v213, %v213
    %v216 = vmul.f32 %v215, -0.001358992
    %v217 = vadd.f32 %v216, 0.041655596
    %v218 = vmul.f32 %v215, %v217
    %v219 = vadd.f32 %v218, -0.4999988
    %v220 = vmul.f32 %v215, %v219
    %v221 = vadd.f32 1.0, %v220
    %v222 = vmul.f32 %v213, %v213
    %v223 = vmul.f32 %v222, -0.00019511016
    %v224 = vadd.f32 %v223, 0.008332121
    %v225 = vmul.f32 %v222, %v224
    %v226 = vadd.f32 %v225, -0.16666654
    %v227 = vmul.f32 %v222, %v226
    %v228 = vadd.f32 %v227, 1.0
    %v229 = vmul.f32 %v228, %v213
    %vm230 = vweird.f32 %v86
    %v231 = vand.u32 %v214, 3
    %vm232 = vcmp.lt.s32.totalorder %v231, 2
    %vm233 = vcmp.eq.s32.totalorder %v231, 0
    %v234 = vxor.u32 %v229, 2147483648
    %v235 = vsel %vm233, %v221, %v234
    %vm236 = vcmp.eq.s32.totalorder %v231, 2
    %v237 = vxor.u32 %v221, 2147483648
    %v238 = vsel %vm236, %v237, %v229
    %v239 = vsel %vm232, %v235, %v238
    %v240 = vsel %vm230, nan, %v239
    %v241 = vand.u32 2147483647, %v86
    %vm242 = vcmp.le.f32.partialorder %v241, 0.7853982
    %vm243 = vcmp.lt.s32.totalorder %v86, 0
    %v244 = vand.u32 %v86, 2139095040
    %v245 = vshrl.u32 %v244, 23
    %v246 = vsub.s32 %v245, 127
    %v247 = vand.u32 2147483647, %v86
    %v248 = vand.u32 %v247, 8388607
    %v249 = vor.u32 %v248, 8388608
    %v250 = vsub.s32 0, %v249
    %v251 = vadd.s32 %v246, 1
    %vm252 = vcmp.gt.s32.totalorder %v251, 0
    %v253 = vsel %vm252, %v251, 0
    %v254 = vshrl.u32 %v253, 5
    %v255 = vand.u32 %v253, 31
    %v256 = vsub.s32 32, %v255
    %v257 = vshrl.u32 683565275, %v256
    %v258 = vshll.u32 683565275, %v255
    %v259 = vshrl.u32 2475754826, %v256
    %v260 = vor.u32 %v258, %v259
    %v261 = vshll.u32 2475754826, %v255
    %v262 = vshrl.u32 2131351028, %v256
    %v263 = vor.u32 %v261, %v262
    %v264 = vshll.u32 2131351028, %v255
    %v265 = vshrl.u32 2102212464, %v256
    %v266 = vor.u32 %v264, %v265
    %v267 = vshll.u32 2102212464, %v255
    %v268 = vshrl.u32 920167782, %v256
    %v269 = vor.u32 %v267, %v268
    %v270 = vshll.u32 920167782, %v255
    %v271 = vshrl.u32 1326507024, %v256
    %v272 = vor.u32 %v270, %v271
    %vm273 = vcmp.lt.s32.totalorder %v254, 1
    %vm274 = vcmp.lt.s32.totalorder %v254, 2
    %vm275 = vcmp.lt.s32.totalorder %v254, 3
    %vm276 = vcmp.lt.s32.totalorder %v254, 4
    %v277 = vsel %vm273, %v257, %v260
    %v278 = vsel %vm276, %v266, 2102212464
    %v279 = vsel %vm275, %v263, %v278
    %v280 = vsel %vm274, %v277, %v279
    %v281 = vsel %vm273, %v260, %v263
    %v282 = vsel %vm276, %v269, 920167782
    %v283 = vsel %vm275, %v266, %v282
    %v284 = vsel %vm274, %v281, %v283
    %v285 = vsel %vm273, %v263, %v266
    %v286 = vsel %vm276, %v272, 1326507024
    %v287 = vsel %vm275, %v269, %v286
    %v288 = vsel %vm274, %v285, %v287
    %v289 = vshll.u32 %v249, 8
    %v290 = vand.u32 %v289, 65535
    %v291 = vshrl.u32 %v289, 16
    %v292 = vand.u32 %v288, 65535
    %v293 = vshrl.u32 %v288, 16
    %v294 = vmul.u32 %v290, %v292
    %v295 = vmul.u32 %v290, %v293
    %v296 = vmul.u32 %v291, %v292
    %v297 = vmul.u32 %v291, %v293
    %v298 = vshll.u32 %v295, 16
    %v299 = vshrl.u32 %v295, 16
    %v300 = vshll.u32 %v296, 16
    %v301 = vshrl.u32 %v296, 16
    %vm302 = vc.u32 %v294, %v298
    %v303 = vsel %vm302, 1, 0
    %v304 = vadd.s32 %v294, %v298
    %v305 = vadd.s32 %v297, %v303
    %vm306 = vc.u32 %v304, %v300
    %v307 = vsel %vm306, 1, 0
    %v308 = vadd.s32 %v304, %v300
    %v309 = vadd.s32 %v305, %v307
    %v310 = vadd.s32 %v309, %v299
    %v311 = vadd.s32 %v310, %v301
    %v312 = vand.u32 %v289, 65535
    %v313 = vshrl.u32 %v289, 16
    %v314 = vand.u32 %v284, 65535
    %v315 = vshrl.u32 %v284, 16
    %v316 = vmul.u32 %v312, %v314
    %v317 = vmul.u32 %v312, %v315
    %v318 = vmul.u32 %v313, %v314
    %v319 = vmul.u32 %v313, %v315
    %v320 = vshll.u32 %v317, 16
    %v321 = vshrl.u32 %v317, 16
    %v322 = vshll.u32 %v318, 16
    %v323 = vshrl.u32 %v318, 16
    %vm324 = vc.u32 %v316, %v320
    %v325 = vsel %vm324, 1, 0
    %v326 = vadd.s32 %v316, %v320
    %v327 = vadd.s32 %v319, %v325
    %vm328 = vc.u32 %v326, %v322
    %v329 = vsel %vm328, 1, 0
    %v330 = vadd.s32 %v326, %v322
    %v331 = vadd.s32 %v327, %v329
    %v332 = vadd.s32 %v331, %v321
    %v333 = vadd.s32 %v332, %v323
    %v334 = vmul.u32 %v289, %v280
    %v335 = vadd.s32 %v311, %v330
    %vm336 = vc.u32 %v311, %v330
    %v337 = vadd.s32 %v333, 1
    %v338 = vsel %vm336, %v337, %v333
    %v339 = vadd.s32 %v334, %v338
    %v340 = vadd.s32 %v339, 536870912
    %v341 = vshrl.u32 %v340, 30
    %v342 = vshll.u32 %v341, 30
    %v343 = vsub.s32 %v339, %v342
    %vm344 = vcmp.lt.s32.totalorder %v343, 0
    %v345 = vsub.s32 0, %v343
    %v346 = vsel %vm344, %v345, %v343
    %v347 = vclz %v346
    %v348 = vsub.s32 %v347, 2
    %vm349 = vcmp.gt.s32.totalorder 0, %v348
    %v350 = vsel %vm349, 0, %v348
    %v351 = vsub.s32 32, %v350
    %v352 = vshll.u32 %v343, %v350
    %v353 = vshrl.u32 %v335, %v351
    %v354 = vor.u32 %v352, %v353
    %v355 = vsub.s32 4294967266, %v350
    %v356 = vadd.s32 %v355, 127
    %v357 = vshll.u32 %v356, 23
    %v358 = vor.u32 4788187, %v357
    %v359 = vand.u32 2147483647, %v358
    %v361 = vcvt.s32.f32 %v354
    %v362 = vmul.f32 %v361, %v359
    %v363 = vxor.u32 %v362, 2147483648
    %v364 = vsel %vm243, %v363, %v362
    %v365 = vsub.s32 4, %v341
    %v366 = vsel %vm243, %v365, %v341
    %v367 = vsel %vm242, %v86, %v364
    %v368 = vsel %vm242, 0, %v366
    %v369 = vmul.f32 %v367, %v367
    %v370 = vmul.f32 %v369, -0.001358992
    %v371 = vadd.f32 %v370, 0.041655596
    %v372 = vmul.f32 %v369, %v371
    %v373 = vadd.f32 %v372, -0.4999988
    %v374 = vmul.f32 %v369, %v373
    %v375 = vadd.f32 1.0, %v374
    %v376 = vmul.f32 %v367, %v367
    %v377 = vmul.f32 %v376, -0.00019511016
    %v378 = vadd.f32 %v377, 0.008332121
    %v379 = vmul.f32 %v376, %v378
    %v380 = vadd.f32 %v379, -0.16666654
    %v381 = vmul.f32 %v376, %v380
    %v382 = vadd.f32 %v381, 1.0
    %v383 = vmul.f32 %v382, %v367
    %vm384 = vweird.f32 %v86
    %v385 = vadd.s32 %v368, 3
    %v386 = vand.u32 %v385, 3
    %vm387 = vcmp.lt.s32.totalorder %v386, 2
    %vm388 = vcmp.eq.s32.totalorder %v386, 0
    %v389 = vxor.u32 %v383, 2147483648
    %v390 = vsel %vm388, %v375, %v389
    %vm391 = vcmp.eq.s32.totalorder %v386, 2
    %v392 = vxor.u32 %v375, 2147483648
    %v393 = vsel %vm391, %v392, %v383
    %v394 = vsel %vm387, %v390, %v393
    %v395 = vsel %vm384, nan, %v394
    %397 = vrot.lane.b32.xlu0 %v240, 16
    %v398 = vpop.permute.xlu0 %397
    %400 = vrot.lane.b32.xlu0 %v240, 32
    %v401 = vpop.permute.xlu0 %400
    %403 = vrot.lane.b32.xlu0 %v240, 48
    %v404 = vpop.permute.xlu0 %403
    %406 = vrot.lane.b32.xlu0 %v240, 64
    %v407 = vpop.permute.xlu0 %406
    %v409 = vsel %vm81, %v240, %v398
    %v410 = vsel %vm83, %v409, %v398
    %v411 = vsel %vm85, %v410, %v401
    %vm412 = vcmask 523264
    %v413 = vsel %vm412, %v411, %v401
    %vm414 = vcmask 654336
    %v415 = vsel %vm414, %v413, %v404
    %vm416 = vcmask 785408
    %v417 = vsel %vm416, %v415, %v404
    %vm418 = vcmask 916480
    %v419 = vsel %vm418, %v417, %v407
    %420 = vst [vmem:[#allocation7] sm:$0xf] %v419
    %422 = vrot.lane.b32.xlu0 %v395, 16
    %v423 = vpop.permute.xlu0 %422
    %425 = vrot.lane.b32.xlu0 %v395, 32
    %v426 = vpop.permute.xlu0 %425
    %428 = vrot.lane.b32.xlu0 %v395, 48
    %v429 = vpop.permute.xlu0 %428
    %431 = vrot.lane.b32.xlu0 %v395, 64
    %v432 = vpop.permute.xlu0 %431
    %v434 = vsel %vm81, %v395, %v423
    %v435 = vsel %vm83, %v434, %v423
    %v436 = vsel %vm85, %v435, %v426
    %v437 = vsel %vm412, %v436, %v426
    %v438 = vsel %vm414, %v437, %v429
    %v439 = vsel %vm416, %v438, %v429
    %v440 = vsel %vm418, %v439, %v432
    %441 = vst [vmem:[#allocation8] sm:$0xf] %v440
    // Predicated region
    $region18: #{tpu_custom_call.1} parent=1 // pred_check
      _
    $region19: #{tpu_custom_call.1} parent=1 // pred_check_branch
      %443 = sbr.rel (0) target = $region21
    $region20: #{tpu_custom_call.1} parent=1 // pred_region
      %445 = vsyncadd [#allocation4], 0
      %s447 = sshll.u32 [#allocation7], 4
      %s448 = int_to_ptr.vmem [resolvable:$true] %s447
      %s449 = sshll.u32 %s2, 4
      %s450 = int_to_ptr.hbm [resolvable:$true] %s449
      %452 = dma.vmem_to_hbm [thread:$0]  %s448, 64, %s450, [#allocation4]
    $region21: #{tpu_custom_call.1} parent=1 // pred_fallthru
      _
    // Predicated region
    $region22: #{tpu_custom_call.1} parent=1 // pred_check
      _
    $region23: #{tpu_custom_call.1} parent=1 // pred_check_branch
      %454 = sbr.rel (0) target = $region25
    $region24: #{tpu_custom_call.1} parent=1 // pred_region
      %456 = vsyncadd [#allocation9], 0
      %s458 = sshll.u32 [#allocation8], 4
      %s459 = int_to_ptr.vmem [resolvable:$true] %s458
      %s460 = sshll.u32 %s3, 4
      %s461 = int_to_ptr.hbm [resolvable:$true] %s460
      %463 = dma.vmem_to_hbm [thread:$0]  %s459, 64, %s461, [#allocation9]
    $region25: #{tpu_custom_call.1} parent=1 // pred_fallthru
      _
    // Predicated region
    $region26: #{tpu_custom_call.1} parent=1 // pred_check
      _
    $region27: #{tpu_custom_call.1} parent=1 // pred_check_branch
      %465 = sbr.rel (0) target = $region29
    $region28: #{tpu_custom_call.1} parent=1 // pred_region
      %467 = dma.done [#allocation4], 64
    $region29: #{tpu_custom_call.1} parent=1 // pred_fallthru
      _
    // Predicated region
    $region30: #{tpu_custom_call.1} parent=1 // pred_check
      _
    $region31: #{tpu_custom_call.1} parent=1 // pred_check_branch
      %469 = sbr.rel (0) target = $region33
    $region32: #{tpu_custom_call.1} parent=1 // pred_region
      %471 = dma.done [#allocation9], 64
    $region33: #{tpu_custom_call.1} parent=1 // pred_fallthru
      _
    %472 = vsyncpa [#allocation3], 1
    %473 = vsyncpa [#allocation6], 1
    %474 = vsyncpa [#allocation4], 1
    %475 = vsyncpa [#allocation9], 1

</llo_original>
